<compile_context>
chip_gen: v5e
topology: v5e:2x2
jax: 0.10.0
libtpu: 0.0.40
codegen_flags: <defaults>
</compile_context>

<pallas_src>
import math

import jax
import jax.numpy as jnp
from jax.experimental import pallas as pl
from jax.experimental.pallas import tpu as pltpu

_LANES = 128
_TILE_ROWS = 4096          # 4096 x 128 x 4B = 2 MiB per f32 tile (amortizes ~0.35 us/step)
_SPLIT_MIN_ROWS = 128      # above this, split single-tile inputs into 2 steps for v7x's 2 TCs
_VMEM_LIMIT = 32 * 1024 * 1024


def _mixexp_kernel(params_ref, t_ref, o_ref):
    # params_ref: SMEM f32[3] = [z, -slope0, -slope1], prefetched once before the grid.
    z = params_ref[0]
    ns0 = params_ref[1]
    ns1 = params_ref[2]
    t = t_ref[...].astype(jnp.float32)   # in-vreg cast; HBM traffic stays in native dtype
    e0 = jnp.exp(t * ns0)                # exp(-t * slope[0])
    e1 = jnp.exp(t * ns1)                # exp(-t * slope[1])
    # z*e0 + (1-z)*e1  ==  e1 + z*(e0 - e1)   (FMA-style blend, fewer VALU ops)
    o_ref[...] = (e1 + z * (e0 - e1)).astype(o_ref.dtype)


def _pick_tiling(rows):
    """Fixed big tiles + cdiv grid (no divisor search, no dropped tail rows)."""
    if rows > _TILE_ROWS:
        tile_rows = _TILE_ROWS
    elif rows >= _SPLIT_MIN_ROWS:
        # Fits in one tile but has enough work to split across v7x's 2 TensorCores:
        # force >= 2 grid steps.  Round the tile to 32 sublanes so the block shape
        # is layout-legal for f32/bf16/int8 alike; the final block may be partial.
        half = -(-rows // 2)
        tile_rows = -(-half // 32) * 32
    else:
        tile_rows = rows                 # single block; full second-minor extent is allowed
    return tile_rows, pl.cdiv(rows, tile_rows)


def mixexp_phi2_fixed_slope(t, mix, slope):
    """t: arbitrary tensor (any float dtype). mix: f32[1], slope: f32[2]."""
    orig_shape = t.shape
    orig_dtype = t.dtype

    # Hoist all scalar math out of the kernel body: one SMEM vector, loaded once.
    mix = mix.astype(jnp.float32)
    slope = slope.astype(jnp.float32)
    z = jax.nn.sigmoid(mix[0])
    params = jnp.stack([z, -slope[0], -slope[1]])   # f32[3], scalar-prefetched to SMEM

    # Flatten to a lane-dense (rows, 128) slab in the NATIVE dtype (no wrapper casts).
    flat = t.reshape(-1)
    n = flat.size
    pad = (-n) % _LANES
    if pad:
        # Only taken for ragged sizes (numel % 128 != 0); typical NCHW tensors and
        # the demo input skip this path entirely (zero extra HBM copies).
        # TODO(synk): stream ragged tails via a masked 1-D boundary block instead of pad/slice.
        flat = jnp.pad(flat, (0, pad))
    rows = flat.size // _LANES
    t2d = flat.reshape(rows, _LANES)

    tile_rows, num_blocks = _pick_tiling(rows)

    out = pl.pallas_call(
        _mixexp_kernel,
        out_shape=jax.ShapeDtypeStruct((rows, _LANES), orig_dtype),
        grid_spec=pltpu.PrefetchScalarGridSpec(
            num_scalar_prefetch=1,          # params -> SMEM; also passed to index_maps
            grid=(num_blocks,),
            in_specs=[
                pl.BlockSpec((tile_rows, _LANES), lambda i, params: (i, 0)),
            ],
            out_specs=pl.BlockSpec((tile_rows, _LANES), lambda i, params: (i, 0)),
        ),
        compiler_params=pltpu.CompilerParams(
            dimension_semantics=("parallel",),   # shards the grid across v7x's 2 TCs
            vmem_limit_bytes=_VMEM_LIMIT,        # > v5e's 16 MiB default, << v7x's 64 MiB
        ),
    )(params, t2d)

    out_flat = out.reshape(-1)
    if pad:
        out_flat = out_flat[:n]
    return out_flat.reshape(orig_shape)


if __name__ == "__main__":
    # Deterministic parameter init (matches the module's __init__):
    mix = jnp.array([math.log(0.25)], dtype=jnp.float32)       # nn.Parameter
    slope = jnp.array([10.0, 1000000.0], dtype=jnp.float32)    # fixed slope tensor

    # Example input t: NCHW (2, 4, 16, 16), non-negative "times".
    key = jax.random.PRNGKey(0)
    t = jax.random.uniform(key, (2, 4, 16, 16), dtype=jnp.float32)

    out = jax.block_until_ready(mixexp_phi2_fixed_slope(t, mix, slope))

    # Pure-JAX reference check (mirrors the PyTorch forward exactly).
    z = 1.0 / (1.0 + jnp.exp(-mix[0]))
    ref = z * jnp.exp(-t * slope[0]) + (1.0 - z) * jnp.exp(-t * slope[1])
    assert out.shape == t.shape and out.dtype == t.dtype
    assert jnp.allclose(out, ref, rtol=1e-6, atol=1e-6)

    print("KERNEL_OK")
</pallas_src>

<mosaic_0001>
module attributes {stable_mosaic.version = 11 : i64} {
  func.func @_mixexp_kernel(%arg0: i32, %arg1: memref<3xf32, #tpu.memory_space<smem>>, %arg2: memref<16x128xf32, #tpu.memory_space<vmem>>, %arg3: memref<16x128xf32, #tpu.memory_space<vmem>>) attributes {dimension_semantics = [#tpu.dimension_semantics<parallel>], iteration_bounds = array<i64: 1>, scalar_prefetch = 1 : i64, scratch_operands = 0 : i64, tpu.core_type = #tpu.core_type<tc>, window_params = [{transform_indices = @transform_0, window_bounds = array<i64: 16, 128>}, {transform_indices = @transform_1, window_bounds = array<i64: 16, 128>}]} {
    %c0 = arith.constant 0 : index
    %0 = memref.load %arg1[%c0] : memref<3xf32, #tpu.memory_space<smem>>
    %c1 = arith.constant 1 : index
    %1 = memref.load %arg1[%c1] : memref<3xf32, #tpu.memory_space<smem>>
    %c2 = arith.constant 2 : index
    %2 = memref.load %arg1[%c2] : memref<3xf32, #tpu.memory_space<smem>>
    %c0_0 = arith.constant 0 : index
    %c0_1 = arith.constant 0 : index
    %3 = vector.load %arg2[%c0_0, %c0_1] : memref<16x128xf32, #tpu.memory_space<vmem>>, vector<16x128xf32>
    %4 = vector.broadcast %1 : f32 to vector<16x128xf32>
    %5 = arith.mulf %3, %4 : vector<16x128xf32>
    %6 = math.exp %5 : vector<16x128xf32>
    %7 = vector.broadcast %2 : f32 to vector<16x128xf32>
    %8 = arith.mulf %3, %7 : vector<16x128xf32>
    %9 = math.exp %8 : vector<16x128xf32>
    %10 = arith.subf %6, %9 : vector<16x128xf32>
    %11 = vector.broadcast %0 : f32 to vector<16x128xf32>
    %12 = arith.mulf %11, %10 : vector<16x128xf32>
    %13 = arith.addf %9, %12 : vector<16x128xf32>
    %c0_2 = arith.constant 0 : index
    %c0_3 = arith.constant 0 : index
    %14 = vector.load %arg3[%c0_2, %c0_3] : memref<16x128xf32, #tpu.memory_space<vmem>>, vector<16x128xf32>
    tpu.vector_store %arg3[%c0_2, %c0_3], %13 {strides = array<i32>} : memref<16x128xf32, #tpu.memory_space<vmem>>, vector<16x128xf32>,
    return
  }
  func.func @transform_0(%arg0: i32, %arg1: memref<3xf32, #tpu.memory_space<smem>>) -> (i32, i32) {
    %c0_i32 = arith.constant 0 : i32
    %c0_i32_0 = arith.constant 0 : i32
    return %arg0, %c0_i32 : i32, i32
  }
  func.func @transform_1(%arg0: i32, %arg1: memref<3xf32, #tpu.memory_space<smem>>) -> (i32, i32) {
    %c0_i32 = arith.constant 0 : i32
    %c0_i32_0 = arith.constant 0 : i32
    return %arg0, %c0_i32 : i32, i32
  }
}

</mosaic_0001>

<llo_original>
// kernel: tpu_custom_call.1
$region0: #{tpu_custom_call.1}
  #allocation0 [shape = 'u32[]', space=smem, size = 0x4, offset = 0x4, fixed_abs, tag = 'smem constant byte address 0x4 - core index']
  #allocation1 [shape = 'u32[72,128]{1,0:T(1,128)}', space=vmem, size = 0x9000, scoped, tag = 'internal scratch']
  #allocation2 [shape = 's32[1]{0}', space=sflag, size = 0x4, scoped, tag = 'scoped memory for tpu_custom_call.1']
  #allocation3 [shape = 'u8[512]{0}', space=smem, size = 0x200, scoped, tag = 'prefetched SMEM operand 0']
  %s0 = inlined_call_operand.hbm [shape: f32[3], index: 0, kind: input, shape index: {}]
  %s1 = inlined_call_operand.hbm [shape: f32[16,128], index: 1, kind: input, shape index: {}]
  %s2 = inlined_call_operand.hbm [shape: f32[16,128], index: 2, kind: output, shape index: {}]
  %s3 = sld [smem:[#allocation0]]
  $region18: #{tpu_custom_call.1} parent=0
    _
  %s5 = ssub.s32 1, %s3
  %s6 = scalar_select 0, %s5, %s3
  %s8 = sshll.u32 %s0, 4
  %s9 = int_to_ptr.hbm [resolvable:$true] %s8
  %11 = dma.hbm_to_smem %s9, 16, [#allocation3], [#allocation2]
  %13 = dma.done [#allocation2], 16
  %14 = sfence
  $region1: #{tpu_custom_call.1} parent=0
    #allocation4 [shape = 'u8[8192]{0}', space=vmem, size = 0x2000, scoped, tag = 'input window, operand 1, single buffered']
    #allocation5 [shape = 's32[1]{0}', space=sflag, size = 0x4, scoped, tag = 'scoped memory for tpu_custom_call.1']
    #allocation6 [shape = 's32[1]{0}', space=sflag, size = 0x4, scoped, tag = 'scoped memory for tpu_custom_call.1']
    #allocation7 [shape = 'u8[8192]{0}', space=vmem, size = 0x2000, scoped, tag = 'output window, operand 0, single buffered']
    %15 = vsyncpa [#allocation5], 0
    %16 = vsyncpa [#allocation6], 0
    // Predicated region
    $region2: #{tpu_custom_call.1} parent=1 // pred_check
      _
    $region3: #{tpu_custom_call.1} parent=1 // pred_check_branch
      %18 = sbr.rel (0) target = $region5
    $region4: #{tpu_custom_call.1} parent=1 // pred_region
      %20 = vsyncadd [#allocation5], 0
      %s21 = sshll.u32 %s1, 4
      %s22 = int_to_ptr.hbm [resolvable:$true] %s21
      %s23 = sshll.u32 [#allocation4], 4
      %s24 = int_to_ptr.vmem [resolvable:$true] %s23
      %29 = dma.hbm_to_vmem [thread:$0]  %s22, 256, %s24, [#allocation5], 128, 128, 8
    $region5: #{tpu_custom_call.1} parent=1 // pred_fallthru
      _
    // Predicated region
    $region6: #{tpu_custom_call.1} parent=1 // pred_check
      _
    $region7: #{tpu_custom_call.1} parent=1 // pred_check_branch
      %31 = sbr.rel (0) target = $region9
    $region8: #{tpu_custom_call.1} parent=1 // pred_region
      %33 = dma.done [#allocation5], 256
    $region9: #{tpu_custom_call.1} parent=1 // pred_fallthru
      _
    %s34 = sld [smem:[#allocation3]]
    %s35 = sld [smem:[#allocation3 + $0x1]]
    %s36 = sld [smem:[#allocation3 + $0x2]]
    %v37 = vld [vmem:[#allocation4] sm:$0xff]
    %v38 = vld [vmem:[#allocation4 + $0x8] sm:$0xff]
    %v39 = vstv %s35
    %v40 = vmul.f32 %v37, %v39
    %v41 = vmul.f32 %v38, %v39
    %v42 = vmul.f32 %v40, 1.442695
    %v43 = vpow.pop %v42
    %v44 = vmul.f32 %v41, 1.442695
    %v45 = vpow.pop %v44
    %v46 = vstv %s36
    %v47 = vmul.f32 %v37, %v46
    %v48 = vmul.f32 %v38, %v46
    %v49 = vmul.f32 %v47, 1.442695
    %v50 = vpow.pop %v49
    %v51 = vmul.f32 %v48, 1.442695
    %v52 = vpow.pop %v51
    %v53 = vsub.f32 %v43, %v50
    %v54 = vsub.f32 %v45, %v52
    %v55 = vstv %s34
    %v56 = vmul.f32 %v55, %v53
    %v57 = vmul.f32 %v55, %v54
    %v58 = vadd.f32 %v50, %v56
    %v59 = vadd.f32 %v52, %v57
    %60 = vst [vmem:[#allocation7] sm:$0xff] %v58
    %61 = vst [vmem:[#allocation7 + $0x8] sm:$0xff] %v59
    // Predicated region
    $region10: #{tpu_custom_call.1} parent=1 // pred_check
      _
    $region11: #{tpu_custom_call.1} parent=1 // pred_check_branch
      %63 = sbr.rel (0) target = $region13
    $region12: #{tpu_custom_call.1} parent=1 // pred_region
      %65 = vsyncadd [#allocation6], 0
      %s66 = sshll.u32 [#allocation7], 4
      %s67 = int_to_ptr.vmem [resolvable:$true] %s66
      %s68 = sshll.u32 %s2, 4
      %s69 = int_to_ptr.hbm [resolvable:$true] %s68
      %74 = dma.vmem_to_hbm [thread:$0]  %s67, 256, %s69, [#allocation6], 128, 128, 8
    $region13: #{tpu_custom_call.1} parent=1 // pred_fallthru
      _
    // Predicated region
    $region14: #{tpu_custom_call.1} parent=1 // pred_check
      _
    $region15: #{tpu_custom_call.1} parent=1 // pred_check_branch
      %76 = sbr.rel (0) target = $region17
    $region16: #{tpu_custom_call.1} parent=1 // pred_region
      %78 = dma.done [#allocation6], 256
    $region17: #{tpu_custom_call.1} parent=1 // pred_fallthru
      _
    %79 = vsyncpa [#allocation5], 1
    %80 = vsyncpa [#allocation6], 1

</llo_original>
